<compile_context>
chip_gen: v7x
topology: tpu7x:2x2x1
jax: 0.10.0
libtpu: 0.0.40
codegen_flags: <defaults>
</compile_context>

<pallas_src>
import functools

import jax
import jax.numpy as jnp
from jax.experimental import pallas as pl
from jax.experimental.pallas import tpu as pltpu

_LANES = 128


def _round_up(x: int, m: int) -> int:
    return ((x + m - 1) // m) * m


# ----------------------------------------------------------------------------
# Kernel: accumulate the three partial sums into a resident (3, 128) block.
#   row 0: sum((real - 1)^2)    row 1: sum(fake^2)    row 2: sum((fake - 1)^2)
# ----------------------------------------------------------------------------
def _lsgan_partial_sums_kernel(real_ref, fake_ref, out_ref):
    @pl.when(pl.program_id(0) == 0)
    def _init():
        out_ref[...] = jnp.zeros_like(out_ref)

    r = real_ref[...].astype(jnp.float32)       # (tr, 128)
    f = fake_ref[...].astype(jnp.float32)       # (tr, 128)
    rm1 = r - 1.0
    fm1 = f - 1.0

    # Sublane (axis 0) reductions -> (1, 128) lane-dense partials.
    out_ref[pl.ds(0, 1), :] += jnp.sum(rm1 * rm1, axis=0, keepdims=True)
    out_ref[pl.ds(1, 1), :] += jnp.sum(f * f, axis=0, keepdims=True)
    out_ref[pl.ds(2, 1), :] += jnp.sum(fm1 * fm1, axis=0, keepdims=True)


# ----------------------------------------------------------------------------
# Wrapper: LSGanLoss.forward(real_logit, fake_logit) -> (d_loss, g_loss)
# ----------------------------------------------------------------------------
@functools.partial(jax.jit, static_argnames=("block_rows",))
def lsgan_loss(real_logit, fake_logit, *, block_rows: int = 2048):
    # Stream in native dtype; the kernel upcasts to f32 for accumulation.
    real = real_logit.reshape(-1)
    fake = fake_logit.reshape(-1)
    n_real = real.shape[0]
    n_fake = fake.shape[0]

    rows_needed = pl.cdiv(max(n_real, n_fake), _LANES)
    tr = min(block_rows, _round_up(rows_needed, 8))
    tr = _round_up(tr, 8)
    grid = pl.cdiv(rows_needed, tr)
    padded_rows = grid * tr
    padded_len = padded_rows * _LANES

    pad_real = padded_len - n_real
    pad_fake = padded_len - n_fake
    r2 = (real if pad_real == 0 else jnp.pad(real, (0, pad_real)))
    f2 = (fake if pad_fake == 0 else jnp.pad(fake, (0, pad_fake)))
    r2 = r2.reshape(padded_rows, _LANES)
    f2 = f2.reshape(padded_rows, _LANES)

    partial = pl.pallas_call(
        _lsgan_partial_sums_kernel,
        out_shape=jax.ShapeDtypeStruct((3, _LANES), jnp.float32),
        grid=(grid,),
        in_specs=[
            pl.BlockSpec((tr, _LANES), lambda i: (i, 0)),
            pl.BlockSpec((tr, _LANES), lambda i: (i, 0)),
        ],
        out_specs=pl.BlockSpec((3, _LANES), lambda i: (0, 0)),
        compiler_params=pltpu.CompilerParams(
            dimension_semantics=("arbitrary",)),  # reduction axis (resident out)
    )(r2, f2)

    sums = jnp.sum(partial, axis=1)               # (3,) tiny final lane reduce
    # Exact correction for the zero padding: each padded 0 adds (0-1)^2 = 1 to
    # the (x-1)^2 sums and 0 to the x^2 sum.
    sum_real_m1 = sums[0] - jnp.float32(pad_real)
    sum_fake_sq = sums[1]
    sum_fake_m1 = sums[2] - jnp.float32(pad_fake)

    d_loss = 0.5 * (sum_real_m1 / n_real + sum_fake_sq / n_fake)
    g_loss = sum_fake_m1 / n_fake
    return d_loss, g_loss


# ----------------------------------------------------------------------------
# Pure-JAX reference (mirrors the PyTorch module exactly)
# ----------------------------------------------------------------------------
def reference_lsgan_loss(real_logit, fake_logit):
    real = real_logit.astype(jnp.float32)
    fake = fake_logit.astype(jnp.float32)
    g_loss = jnp.mean((fake - 1.0) ** 2)
    d_loss = 0.5 * (jnp.mean((real - 1.0) ** 2) + jnp.mean(fake ** 2))
    return d_loss, g_loss


if __name__ == "__main__":
    key = jax.random.PRNGKey(0)
    k_r, k_f, k_r2, k_f2 = jax.random.split(key, 4)

    # Patch-GAN style logits: batch=2, 1 channel, 16x16 spatial.
    real = jax.random.normal(k_r, (2, 1, 16, 16), jnp.float32) * 0.5 + 0.8
    fake = jax.random.normal(k_f, (2, 1, 16, 16), jnp.float32) * 0.5 + 0.1

    d, g = lsgan_loss(real, fake)
    d, g = jax.block_until_ready(d), jax.block_until_ready(g)
    d_ref, g_ref = reference_lsgan_loss(real, fake)
    assert jnp.allclose(d, d_ref, atol=1e-5, rtol=1e-5), (float(d), float(d_ref))
    assert jnp.allclose(g, g_ref, atol=1e-5, rtol=1e-5), (float(g), float(g_ref))

    # Second check: differently-shaped real/fake batches (exercises padding).
    real_b = jax.random.normal(k_r2, (3, 1, 12, 12), jnp.float32)
    fake_b = jax.random.normal(k_f2, (5, 1, 16, 16), jnp.float32)
    d2, g2 = jax.block_until_ready(lsgan_loss(real_b, fake_b))
    d2_ref, g2_ref = reference_lsgan_loss(real_b, fake_b)
    assert jnp.allclose(d2, d2_ref, atol=1e-5, rtol=1e-5), (float(d2), float(d2_ref))
    assert jnp.allclose(g2, g2_ref, atol=1e-5, rtol=1e-5), (float(g2), float(g2_ref))

    # Third check: bf16 inputs streamed in native dtype (half HBM traffic),
    # accumulated in f32 inside the kernel.
    real_h = (jax.random.normal(k_r, (4, 1, 16, 16), jnp.float32) * 0.5).astype(jnp.bfloat16)
    fake_h = (jax.random.normal(k_f, (4, 1, 16, 16), jnp.float32) * 0.5).astype(jnp.bfloat16)
    d3, g3 = jax.block_until_ready(lsgan_loss(real_h, fake_h))
    d3_ref, g3_ref = reference_lsgan_loss(real_h, fake_h)
    assert jnp.allclose(d3, d3_ref, atol=1e-4, rtol=1e-4), (float(d3), float(d3_ref))
    assert jnp.allclose(g3, g3_ref, atol=1e-4, rtol=1e-4), (float(g3), float(g3_ref))

    print("KERNEL_OK")
</pallas_src>

<mosaic_0001>
module attributes {stable_mosaic.version = 11 : i64} {
  func.func @_lsgan_partial_sums_kernel(%arg0: i32, %arg1: memref<8x128xf32, #tpu.memory_space<vmem>>, %arg2: memref<8x128xf32, #tpu.memory_space<vmem>>, %arg3: memref<3x128xf32, #tpu.memory_space<vmem>>) attributes {dimension_semantics = [#tpu.dimension_semantics<arbitrary>], iteration_bounds = array<i64: 1>, scalar_prefetch = 0 : i64, scratch_operands = 0 : i64, tpu.core_type = #tpu.core_type<tc>, window_params = [{transform_indices = @transform_0, window_bounds = array<i64: 8, 128>}, {transform_indices = @transform_1, window_bounds = array<i64: 8, 128>}, {pipeline_mode = #tpu.pipeline_mode<synchronous>, transform_indices = @transform_2, window_bounds = array<i64: 3, 128>}]} {
    %c0_i32 = arith.constant 0 : i32
    %0 = arith.cmpi eq, %arg0, %c0_i32 : i32
    %1 = arith.extui %0 : i1 to i32
    %c0_i32_0 = arith.constant 0 : i32
    %2 = arith.cmpi ne, %1, %c0_i32_0 : i32
    scf.if %2 {
      %cst_18 = arith.constant 0.000000e+00 : f32
      %27 = vector.broadcast %cst_18 : f32 to vector<3x128xf32>
      %c0_19 = arith.constant 0 : index
      %c0_20 = arith.constant 0 : index
      %28 = vector.load %arg3[%c0_19, %c0_20] : memref<3x128xf32, #tpu.memory_space<vmem>>, vector<3x128xf32>
      tpu.vector_store %arg3[%c0_19, %c0_20], %27 {strides = array<i32>} : memref<3x128xf32, #tpu.memory_space<vmem>>, vector<3x128xf32>,
    } else {
    }
    %c0 = arith.constant 0 : index
    %c0_1 = arith.constant 0 : index
    %3 = vector.load %arg1[%c0, %c0_1] : memref<8x128xf32, #tpu.memory_space<vmem>>, vector<8x128xf32>
    %c0_2 = arith.constant 0 : index
    %c0_3 = arith.constant 0 : index
    %4 = vector.load %arg2[%c0_2, %c0_3] : memref<8x128xf32, #tpu.memory_space<vmem>>, vector<8x128xf32>
    %cst = arith.constant 1.000000e+00 : f32
    %5 = vector.broadcast %cst : f32 to vector<8x128xf32>
    %6 = arith.subf %3, %5 : vector<8x128xf32>
    %cst_4 = arith.constant 1.000000e+00 : f32
    %7 = vector.broadcast %cst_4 : f32 to vector<8x128xf32>
    %8 = arith.subf %4, %7 : vector<8x128xf32>
    %c0_5 = arith.constant 0 : index
    %c0_6 = arith.constant 0 : index
    %9 = vector.load %arg3[%c0_5, %c0_6] : memref<3x128xf32, #tpu.memory_space<vmem>>, vector<1x128xf32>
    %10 = arith.mulf %6, %6 : vector<8x128xf32>
    %cst_7 = arith.constant dense<0.000000e+00> : vector<128xf32>
    %11 = vector.multi_reduction <add>, %10, %cst_7 [0] : vector<8x128xf32> to vector<128xf32>
    %12 = vector.shape_cast %11 : vector<128xf32> to vector<1x128xf32>
    %13 = arith.addf %9, %12 : vector<1x128xf32>
    %c0_8 = arith.constant 0 : index
    %c0_9 = arith.constant 0 : index
    %14 = vector.load %arg3[%c0_8, %c0_9] : memref<3x128xf32, #tpu.memory_space<vmem>>, vector<1x128xf32>
    tpu.vector_store %arg3[%c0_8, %c0_9], %13 {strides = array<i32>} : memref<3x128xf32, #tpu.memory_space<vmem>>, vector<1x128xf32>,
    %c1 = arith.constant 1 : index
    %c0_10 = arith.constant 0 : index
    %15 = vector.load %arg3[%c1, %c0_10] : memref<3x128xf32, #tpu.memory_space<vmem>>, vector<1x128xf32>
    %16 = arith.mulf %4, %4 : vector<8x128xf32>
    %cst_11 = arith.constant dense<0.000000e+00> : vector<128xf32>
    %17 = vector.multi_reduction <add>, %16, %cst_11 [0] : vector<8x128xf32> to vector<128xf32>
    %18 = vector.shape_cast %17 : vector<128xf32> to vector<1x128xf32>
    %19 = arith.addf %15, %18 : vector<1x128xf32>
    %c1_12 = arith.constant 1 : index
    %c0_13 = arith.constant 0 : index
    %20 = vector.load %arg3[%c1_12, %c0_13] : memref<3x128xf32, #tpu.memory_space<vmem>>, vector<1x128xf32>
    tpu.vector_store %arg3[%c1_12, %c0_13], %19 {strides = array<i32>} : memref<3x128xf32, #tpu.memory_space<vmem>>, vector<1x128xf32>,
    %c2 = arith.constant 2 : index
    %c0_14 = arith.constant 0 : index
    %21 = vector.load %arg3[%c2, %c0_14] : memref<3x128xf32, #tpu.memory_space<vmem>>, vector<1x128xf32>
    %22 = arith.mulf %8, %8 : vector<8x128xf32>
    %cst_15 = arith.constant dense<0.000000e+00> : vector<128xf32>
    %23 = vector.multi_reduction <add>, %22, %cst_15 [0] : vector<8x128xf32> to vector<128xf32>
    %24 = vector.shape_cast %23 : vector<128xf32> to vector<1x128xf32>
    %25 = arith.addf %21, %24 : vector<1x128xf32>
    %c2_16 = arith.constant 2 : index
    %c0_17 = arith.constant 0 : index
    %26 = vector.load %arg3[%c2_16, %c0_17] : memref<3x128xf32, #tpu.memory_space<vmem>>, vector<1x128xf32>
    tpu.vector_store %arg3[%c2_16, %c0_17], %25 {strides = array<i32>} : memref<3x128xf32, #tpu.memory_space<vmem>>, vector<1x128xf32>,
    return
  }
  func.func @transform_0(%arg0: i32) -> (i32, i32) {
    %c0_i32 = arith.constant 0 : i32
    %c0_i32_0 = arith.constant 0 : i32
    return %arg0, %c0_i32 : i32, i32
  }
  func.func @transform_1(%arg0: i32) -> (i32, i32) {
    %c0_i32 = arith.constant 0 : i32
    %c0_i32_0 = arith.constant 0 : i32
    return %arg0, %c0_i32 : i32, i32
  }
  func.func @transform_2(%arg0: i32) -> (i32, i32) {
    %c0_i32 = arith.constant 0 : i32
    %c0_i32_0 = arith.constant 0 : i32
    %c0_i32_1 = arith.constant 0 : i32
    return %c0_i32, %c0_i32_0 : i32, i32
  }
}

</mosaic_0001>

<llo_original>
// kernel: lsgan_loss.1
$region0: #{lsgan_loss.1}
  #allocation0 [shape = 'u32[]', space=smem, size = 0x4, offset = 0x4, fixed_abs, tag = 'smem constant byte address 0x4 - core index']
  #allocation1 [shape = 'u32[144,128]{1,0:T(1,128)}', space=vmem, size = 0x12000, scoped, tag = 'internal scratch']
  %s0 = inlined_call_operand.vmem [shape: f32[8,128], index: 0, kind: input, shape index: {}]
  %s1 = inlined_call_operand.vmem [shape: f32[8,128], index: 1, kind: input, shape index: {}]
  %s2 = inlined_call_operand.vmem [shape: f32[3,128], index: 2, kind: output, shape index: {}]
  %s3 = sld [smem:[#allocation0]]
  $region22: #{lsgan_loss.1} parent=0
    _
  %s5 = ssub.s32 1, %s3
  %s6 = scalar_select 0, %s5, %s3
  // Predicated region
  $region2: #{lsgan_loss.1} parent=0 // pred_check
    _
  $region3: #{lsgan_loss.1} parent=0 // pred_check_branch
    %8 = sbr.rel (0) target = $region5
  $region4: #{lsgan_loss.1} parent=0 // pred_region
    _
  $region5: #{lsgan_loss.1} parent=0 // pred_fallthru
    _
  // Predicated region
  $region6: #{lsgan_loss.1} parent=0 // pred_check
    _
  $region7: #{lsgan_loss.1} parent=0 // pred_check_branch
    %10 = sbr.rel (0) target = $region9
  $region8: #{lsgan_loss.1} parent=0 // pred_region
    _
  $region9: #{lsgan_loss.1} parent=0 // pred_fallthru
    _
  %p11 = scmp.eq.s32.totalorder 0, 0
  // Predicated region
  $region10: #{lsgan_loss.1} parent=0 // pred_check
    %p12 = pneg %p11
  $region11: #{lsgan_loss.1} parent=0 // pred_check_branch
    %14 = sbr.rel (%p12) target = $region13
  $region12: #{lsgan_loss.1} parent=0 // pred_region
    %15 = vst [vmem:[%s2] sm:$0x7] 0.0
  $region13: #{lsgan_loss.1} parent=0 // pred_fallthru
    _
  %v16 = vld [vmem:[%s0] sm:$0xff]
  %v17 = vld [vmem:[%s1] sm:$0xff]
  %v18 = vsub.f32 %v16, 1.0
  %v19 = vsub.f32 %v17, 1.0
  %v20 = vld [vmem:[%s2] sm:$0x1]
  %v21 = vmul.f32 %v18, %v18
  %v22 = vrot.slane %v21, 4
  %v23 = vadd.f32 %v21, %v22
  %v24 = vrot.slane %v23, 2
  %v25 = vadd.f32 %v23, %v24
  %v26 = vrot.slane %v25, 1
  %v27 = vadd.f32 %v25, %v26
  %v28 = vadd.f32 %v20, %v27
  %29 = vst [vmem:[%s2] sm:$0x1] %v28
  %v30 = vld [vmem:[%s2 + $0x1] sm:$0x1]
  %v31 = vmul.f32 %v17, %v17
  %v32 = vrot.slane %v31, 4
  %v33 = vadd.f32 %v31, %v32
  %v34 = vrot.slane %v33, 2
  %v35 = vadd.f32 %v33, %v34
  %v36 = vrot.slane %v35, 1
  %v37 = vadd.f32 %v35, %v36
  %v38 = vadd.f32 %v30, %v37
  %39 = vst [vmem:[%s2 + $0x1] sm:$0x1] %v38
  %v40 = vld [vmem:[%s2 + $0x2] sm:$0x1]
  %v41 = vmul.f32 %v19, %v19
  %v42 = vrot.slane %v41, 4
  %v43 = vadd.f32 %v41, %v42
  %v44 = vrot.slane %v43, 2
  %v45 = vadd.f32 %v43, %v44
  %v46 = vrot.slane %v45, 1
  %v47 = vadd.f32 %v45, %v46
  %v48 = vadd.f32 %v40, %v47
  %49 = vst [vmem:[%s2 + $0x2] sm:$0x1] %v48
  // Predicated region
  $region14: #{lsgan_loss.1} parent=0 // pred_check
    _
  $region15: #{lsgan_loss.1} parent=0 // pred_check_branch
    %51 = sbr.rel (0) target = $region17
  $region16: #{lsgan_loss.1} parent=0 // pred_region
    _
  $region17: #{lsgan_loss.1} parent=0 // pred_fallthru
    _
  // Predicated region
  $region18: #{lsgan_loss.1} parent=0 // pred_check
    _
  $region19: #{lsgan_loss.1} parent=0 // pred_check_branch
    %53 = sbr.rel (0) target = $region21
  $region20: #{lsgan_loss.1} parent=0 // pred_region
    _
  $region21: #{lsgan_loss.1} parent=0 // pred_fallthru
    _

</llo_original>
